<compile_context>
chip_gen: v7x
topology: tpu7x:2x2x1
jax: 0.10.0
libtpu: 0.0.40
codegen_flags: <defaults>
</compile_context>

<pallas_src>
import jax
import jax.numpy as jnp
from jax.experimental import pallas as pl
from jax.experimental.pallas import tpu as pltpu


def _copy_kernel(v_ref, o_ref):
    # NoneAttention forward semantics: output = V.
    o_ref[...] = v_ref[...]


# ~2 MiB blocks: past the ~85%-of-HBM-roofline knee for copy-style kernels,
# and small enough that double-buffered in+out (4x block bytes) fits every
# generation's default scoped VMEM with headroom (incl. v7x's 64 MiB physical).
_TARGET_BLOCK_BYTES = 2 * 1024 * 1024
_MAX_COLS = 8192  # lane-dense width cap (64 x 128 lanes)


def _lane_dense_shape(total):
    """Pick (rows, cols) with cols a large multiple of 128, or None if impossible."""
    if total % 128 != 0:
        return None
    cols = 128
    while total % (cols * 2) == 0 and cols * 2 <= _MAX_COLS:
        cols *= 2
    return total // cols, cols


def none_attention_pallas_copy(V):
    """Identity copy of V through a tiled, lane-dense Pallas kernel."""
    total = V.size
    itemsize = jnp.dtype(V.dtype).itemsize

    rc = _lane_dense_shape(total)
    if rc is None:
        # Odd total size: single full-array block (block == full dims is always
        # a legal layout).  Fine for small/irregular shapes; typical LRA shapes
        # (S, D multiples of 8/32) always take the lane-dense path below.
        rows, cols = 1, total
        block_rows = 1
    else:
        rows, cols = rc
        # Rows per block so that block bytes ~= _TARGET_BLOCK_BYTES, rounded to
        # a multiple of 8 (sublane tiling); Pallas handles a ragged last block.
        max_rows = max(8, (_TARGET_BLOCK_BYTES // (cols * itemsize)) // 8 * 8)
        block_rows = min(rows, max_rows)
        if block_rows < rows:
            block_rows = max(8, (block_rows // 8) * 8)

    flat = V.reshape(rows, cols)  # contiguous reshape: layout plumbing only
    grid = (pl.cdiv(rows, block_rows),)
    spec = pl.BlockSpec((block_rows, cols), lambda i: (i, 0))

    out = pl.pallas_call(
        _copy_kernel,
        out_shape=jax.ShapeDtypeStruct((rows, cols), V.dtype),
        grid=grid,
        in_specs=[spec],          # only V is streamed; Q/K/mask never enter the pipeline
        out_specs=spec,
        input_output_aliases={0: 0},  # reuse V's buffer for the output
        compiler_params=pltpu.CompilerParams(
            dimension_semantics=("parallel",)  # shards across v7x's 2 TensorCores
        ),
    )(flat)
    return out.reshape(V.shape)


def none_attention(Q, K, V, mask, *, materialize=True):
    """Pallas implementation of NoneAttention.forward: returns V; Q, K, mask ignored.

    materialize=False is the zero-cost production path (returns V itself: zero
    HBM traffic -- nothing can beat that for an identity op).
    materialize=True routes V through the Pallas identity-copy kernel (kept for
    benchmarking / fusion parity) at the minimal read-V + write-V roofline.
    """
    del Q, K, mask  # unused by the module's forward
    if not materialize:
        return V
    return none_attention_pallas_copy(V)


if __name__ == "__main__":
    key = jax.random.PRNGKey(0)
    kq, kk, kv, k2, k3 = jax.random.split(key, 5)

    # Primary test: shapes consistent with the module's (B, H, S, D) inputs.
    B, H, S, D = 2, 2, 8, 32
    Q = jax.random.normal(kq, (B, H, S, D), dtype=jnp.float32)
    K = jax.random.normal(kk, (B, H, S, D), dtype=jnp.float32)
    V = jax.random.normal(kv, (B, H, S, D), dtype=jnp.float32)
    mask = jnp.ones((B, S), dtype=jnp.float32)

    out = none_attention(Q, K, V, mask)  # runs the Pallas copy kernel
    out = jax.block_until_ready(out)
    assert out.shape == V.shape and out.dtype == V.dtype
    assert bool(jnp.array_equal(out, V))

    # Zero-traffic production path parity.
    out_fast = none_attention(Q, K, V, mask, materialize=False)
    assert out_fast is V

    # Multi-block tiled path (grid > 1, ~2 MiB lane-dense blocks).
    V2 = jax.random.normal(k2, (4, 8, 1024, 64), dtype=jnp.float32)
    out2 = jax.block_until_ready(none_attention_pallas_copy(V2))
    assert bool(jnp.array_equal(out2, V2))

    # Irregular-size fallback path (total not a multiple of 128).
    V3 = jax.random.normal(k3, (2, 2, 7, 24), dtype=jnp.float32)
    out3 = jax.block_until_ready(none_attention_pallas_copy(V3))
    assert bool(jnp.array_equal(out3, V3))

    print("KERNEL_OK")
</pallas_src>

<mosaic_0001>
module attributes {stable_mosaic.version = 11 : i64} {
  func.func @_copy_kernel(%arg0: i32, %arg1: memref<1x1024xf32, #tpu.memory_space<vmem>>, %arg2: memref<1x1024xf32, #tpu.memory_space<vmem>>) attributes {dimension_semantics = [#tpu.dimension_semantics<parallel>], iteration_bounds = array<i64: 1>, scalar_prefetch = 0 : i64, scratch_operands = 0 : i64, tpu.core_type = #tpu.core_type<tc>, window_params = [{transform_indices = @transform_0, window_bounds = array<i64: 1, 1024>}, {transform_indices = @transform_1, window_bounds = array<i64: 1, 1024>}]} {
    %c0 = arith.constant 0 : index
    %c0_0 = arith.constant 0 : index
    %0 = vector.load %arg1[%c0, %c0_0] : memref<1x1024xf32, #tpu.memory_space<vmem>>, vector<1x1024xf32>
    %c0_1 = arith.constant 0 : index
    %c0_2 = arith.constant 0 : index
    %1 = vector.load %arg2[%c0_1, %c0_2] : memref<1x1024xf32, #tpu.memory_space<vmem>>, vector<1x1024xf32>
    tpu.vector_store %arg2[%c0_1, %c0_2], %0 {strides = array<i32>} : memref<1x1024xf32, #tpu.memory_space<vmem>>, vector<1x1024xf32>,
    return
  }
  func.func @transform_0(%arg0: i32) -> (i32, i32) {
    %c0_i32 = arith.constant 0 : i32
    %c0_i32_0 = arith.constant 0 : i32
    return %arg0, %c0_i32 : i32, i32
  }
  func.func @transform_1(%arg0: i32) -> (i32, i32) {
    %c0_i32 = arith.constant 0 : i32
    %c0_i32_0 = arith.constant 0 : i32
    return %arg0, %c0_i32 : i32, i32
  }
}

</mosaic_0001>

<llo_original>
// kernel: tpu_custom_call.1
$region0: #{tpu_custom_call.1}
  #allocation0 [shape = 'u32[]', space=smem, size = 0x4, offset = 0x4, fixed_abs, tag = 'smem constant byte address 0x4 - core index']
  #allocation1 [shape = 'u32[144,128]{1,0:T(1,128)}', space=vmem, size = 0x12000, scoped, tag = 'internal scratch']
  %s0 = inlined_call_operand.hbm [shape: f32[1,1024], index: 0, kind: input, shape index: {}, may-alias: {0,1}]
  %s1 = inlined_call_operand.hbm [shape: f32[1,1024], index: 1, kind: output, shape index: {}, may-alias: {0,1}]
  %s2 = sld [smem:[#allocation0]]
  $region18: #{tpu_custom_call.1} parent=0
    _
  %s4 = ssub.s32 1, %s2
  %s5 = scalar_select 0, %s4, %s2
  $region1: #{tpu_custom_call.1} parent=0
    #allocation2 [shape = 'u8[4096]{0}', space=vmem, size = 0x1000, scoped, tag = 'input window, operand 0, single buffered']
    #allocation3 [shape = 's32[1]{0}', space=sflag, size = 0x4, scoped, tag = 'scoped memory for tpu_custom_call.1']
    #allocation4 [shape = 's32[1]{0}', space=sflag, size = 0x4, scoped, tag = 'scoped memory for tpu_custom_call.1']
    #allocation5 [shape = 'u8[4096]{0}', space=vmem, size = 0x1000, scoped, tag = 'output window, operand 0, single buffered']
    %6 = vsyncpa [#allocation3], 0
    %7 = vsyncpa [#allocation4], 0
    // Predicated region
    $region2: #{tpu_custom_call.1} parent=1 // pred_check
      _
    $region3: #{tpu_custom_call.1} parent=1 // pred_check_branch
      %9 = sbr.rel (0) target = $region5
    $region4: #{tpu_custom_call.1} parent=1 // pred_region
      %s11 = ssub.s32 128, 128
      %12 = vsyncadd [#allocation3], %s11
      %s14 = sshll.u32 [#allocation2], 4
      %s15 = int_to_ptr.vmem [resolvable:$true] %s14
      %17 = dma.hbm_to_vmem [thread:$0]  %s0, 128, %s15, [#allocation3]
    $region5: #{tpu_custom_call.1} parent=1 // pred_fallthru
      _
    // Predicated region
    $region6: #{tpu_custom_call.1} parent=1 // pred_check
      _
    $region7: #{tpu_custom_call.1} parent=1 // pred_check_branch
      %19 = sbr.rel (0) target = $region9
    $region8: #{tpu_custom_call.1} parent=1 // pred_region
      %20 = dma.done [#allocation3], 128
    $region9: #{tpu_custom_call.1} parent=1 // pred_fallthru
      _
    %v21 = vld [vmem:[#allocation2] sm:$0xff]
    %22 = vst [vmem:[#allocation5] sm:$0xff] %v21
    // Predicated region
    $region10: #{tpu_custom_call.1} parent=1 // pred_check
      _
    $region11: #{tpu_custom_call.1} parent=1 // pred_check_branch
      %24 = sbr.rel (0) target = $region13
    $region12: #{tpu_custom_call.1} parent=1 // pred_region
      %s26 = ssub.s32 128, 128
      %27 = vsyncadd [#allocation4], %s26
      %s29 = sshll.u32 [#allocation5], 4
      %s30 = int_to_ptr.vmem [resolvable:$true] %s29
      %32 = dma.vmem_to_hbm [thread:$0]  %s30, 128, %s1, [#allocation4]
    $region13: #{tpu_custom_call.1} parent=1 // pred_fallthru
      _
    // Predicated region
    $region14: #{tpu_custom_call.1} parent=1 // pred_check
      _
    $region15: #{tpu_custom_call.1} parent=1 // pred_check_branch
      %34 = sbr.rel (0) target = $region17
    $region16: #{tpu_custom_call.1} parent=1 // pred_region
      %35 = dma.done [#allocation4], 128
    $region17: #{tpu_custom_call.1} parent=1 // pred_fallthru
      _
    %36 = vsyncpa [#allocation3], 1
    %37 = vsyncpa [#allocation4], 1

</llo_original>
